<compile_context>
chip_gen: v5e
topology: v5e:2x2
jax: 0.10.0
libtpu: 0.0.40
codegen_flags: <defaults>
</compile_context>

<pallas_src>
import functools

import jax
import jax.numpy as jnp
from jax.experimental import pallas as pl
from jax.experimental.pallas import tpu as pltpu

INPUT_DIM = 10
HIDDEN = (64, 64)
OUT_DIM = 1
LANE = 128
K_PAD = 16  # feature dim padded to the bf16 sublane pack: 10 features + 1 bias row + 5 zero rows


def mlp_kernel(x_ref, w1_ref, w2_ref, b2_ref, w3_ref, b3_ref, o_ref):
    # x_ref: (K_PAD, tile_b) bf16 -- batch on lanes; row 10 == 1.0 (bias), rows 11..15 == 0.
    x = x_ref[...]

    # Layer 1 (bias folded into the weight): (64, 16) @ (16, tile_b) -> (64, tile_b), f32 acc.
    h1 = jnp.dot(w1_ref[...], x, preferred_element_type=jnp.float32)
    h1 = jnp.maximum(h1, 0.0)                                    # ReLU

    # Layer 2: (64, 64) @ (64, tile_b) -> (64, tile_b), f32 acc + bias.
    h2 = jnp.dot(w2_ref[...], h1.astype(w2_ref.dtype),
                 preferred_element_type=jnp.float32) + b2_ref[...]
    h2 = jnp.maximum(h2, 0.0)                                    # ReLU

    # Layer 3 (N = 1): VPU multiply + XLU cross-sublane reduce instead of a
    # near-empty MXU pass (review item 6: keep unless VALU is measured to saturate).
    out = jnp.sum(w3_ref[...] * h2, axis=0, keepdims=True) + b3_ref[...]

    o_ref[...] = out.astype(o_ref.dtype)                         # (1, tile_b), lane-dense store


@functools.partial(jax.jit, static_argnames=("tile_b",))
def discriminator_forward(x, params, *, tile_b=2048):
    """x: (B, INPUT_DIM) float32.  Returns (B, 1) float32 (matches Discriminator.forward)."""
    w1, b1, w2, b2, w3c, b3 = params
    B, D = x.shape
    assert D == INPUT_DIM

    # --- tile-size selection (review items 1 & 2) ---------------------------
    B_lane = pl.cdiv(B, LANE) * LANE            # batch rounded up to lane width
    tile_b = min(tile_b, B_lane)
    if B_lane >= 2 * LANE:
        # Keep >= 2 grid steps so the "parallel" batch axis shards over both TCs on v7x.
        tile_b = min(tile_b, (B_lane // 2 // LANE) * LANE)
    tile_b = max(LANE, (tile_b // LANE) * LANE)
    B_pad = pl.cdiv(B, tile_b) * tile_b
    grid = (B_pad // tile_b,)

    # --- operand prep (review items 3 & 4) -----------------------------------
    # Feature-major bf16 input with the bias row folded in:
    #   rows 0..9 -> features, row 10 -> 1.0, rows 11..15 -> 0.
    # This producer is allowed to fuse into the Pallas operand path (allow_input_fusion
    # below); the whole forward is jit-ed so the fusion can happen.
    x_aug = jnp.concatenate([x, jnp.ones((B, 1), x.dtype)], axis=1)          # (B, 11)
    x_aug = jnp.pad(x_aug, ((0, B_pad - B), (0, K_PAD - (INPUT_DIM + 1))))   # (B_pad, 16)
    x_t = x_aug.T.astype(jnp.bfloat16)                                       # (16, B_pad)

    # Layer-1 weight with the bias folded in as column 10 (columns 11..15 zero).
    w1_aug = jnp.concatenate(
        [w1, b1, jnp.zeros((HIDDEN[0], K_PAD - (INPUT_DIM + 1)), w1.dtype)],
        axis=1).astype(jnp.bfloat16)                                         # (64, 16)
    w2_bf = w2.astype(jnp.bfloat16)                                          # (64, 64)

    # Weights/biases are tiny and constant across the grid: full-array blocks whose
    # block index never changes, so their DMAs are not re-issued per step (item 5).
    full = lambda a: pl.BlockSpec(a.shape, lambda i: (0, 0))

    out = pl.pallas_call(
        mlp_kernel,
        out_shape=jax.ShapeDtypeStruct((OUT_DIM, B_pad), jnp.float32),
        grid_spec=pltpu.PrefetchScalarGridSpec(
            num_scalar_prefetch=0,
            grid=grid,
            in_specs=[
                pl.BlockSpec((K_PAD, tile_b), lambda i: (0, i)),   # x tile, batch on lanes
                full(w1_aug),
                full(w2_bf), full(b2),
                full(w3c), full(b3),
            ],
            out_specs=pl.BlockSpec((OUT_DIM, tile_b), lambda i: (0, i)),
        ),
        compiler_params=pltpu.CompilerParams(
            dimension_semantics=("parallel",),   # batch steps shard across TCs (v7x)
            # Let XLA fuse the concat/pad/transpose/cast producing x_t into the
            # kernel's operand path instead of a separate HBM round trip (item 3).
            allow_input_fusion=[True, False, False, False, False, False],
        ),
    )(x_t, w1_aug, w2_bf, b2, w3c, b3)

    # (1, B_pad) -> (B, 1), matching Discriminator.forward.
    return out[0, :B][:, None]


def init_params(key):
    """Deterministic synthetic init; shapes match the PyTorch module (torch (out,in) layout)."""
    dims = (INPUT_DIM,) + HIDDEN + (OUT_DIM,)
    layers = []
    for din, dout in zip(dims[:-1], dims[1:]):
        key, kw, kb = jax.random.split(key, 3)
        scale = 1.0 / jnp.sqrt(jnp.float32(din))  # torch Linear-style fan-in scale
        w = jax.random.uniform(kw, (dout, din), jnp.float32, -scale, scale)  # (out, in)
        b = jax.random.uniform(kb, (dout, 1), jnp.float32, -scale, scale)    # column bias
        layers.append((w, b))
    (w1, b1), (w2, b2), (w3, b3) = layers
    # Final layer weight stored as a (64, 1) column for the VPU/XLU reduce path.
    return (w1, b1, w2, b2, w3.T, b3)


def reference_forward(x, params):
    """Pure-JAX f32 reference (same math as the torch module)."""
    w1, b1, w2, b2, w3c, b3 = params
    h1 = jnp.maximum(x @ w1.T + b1.T, 0.0)
    h2 = jnp.maximum(h1 @ w2.T + b2.T, 0.0)
    return h2 @ w3c + b3.T


if __name__ == "__main__":
    key = jax.random.PRNGKey(0)
    key, kx = jax.random.split(key)
    params = init_params(key)

    # Small demo batch (matches the module's natural input: (B, 10)).
    B = 16
    x = jax.random.normal(kx, (B, INPUT_DIM), jnp.float32)
    out = jax.block_until_ready(discriminator_forward(x, params))
    ref = reference_forward(x, params)
    assert out.shape == (B, OUT_DIM)
    # bf16 MXU operands -> loosen tolerance vs the f32 reference.
    assert jnp.allclose(out, ref, atol=3e-2, rtol=3e-2), "mismatch vs reference (small batch)"

    # Larger batch exercises a multi-step "parallel" grid (>= 2 steps -> both TCs on v7x).
    key, kx2 = jax.random.split(key)
    B2 = 1024
    x2 = jax.random.normal(kx2, (B2, INPUT_DIM), jnp.float32)
    out2 = jax.block_until_ready(discriminator_forward(x2, params))
    ref2 = reference_forward(x2, params)
    assert out2.shape == (B2, OUT_DIM)
    assert jnp.allclose(out2, ref2, atol=3e-2, rtol=3e-2), "mismatch vs reference (large batch)"

    print("KERNEL_OK")
</pallas_src>

<mosaic_0001>
module attributes {stable_mosaic.version = 11 : i64} {
  func.func @mlp_kernel(%arg0: i32, %arg1: memref<16x128xbf16, #tpu.memory_space<vmem>>, %arg2: memref<64x16xbf16, #tpu.memory_space<vmem>>, %arg3: memref<64x64xbf16, #tpu.memory_space<vmem>>, %arg4: memref<64x1xf32, #tpu.memory_space<vmem>>, %arg5: memref<64x1xf32, #tpu.memory_space<vmem>>, %arg6: memref<1x1xf32, #tpu.memory_space<vmem>>, %arg7: memref<1x128xf32, #tpu.memory_space<vmem>>) attributes {dimension_semantics = [#tpu.dimension_semantics<parallel>], iteration_bounds = array<i64: 1>, scalar_prefetch = 0 : i64, scratch_operands = 0 : i64, tpu.core_type = #tpu.core_type<tc>, window_params = [{transform_indices = @transform_0, window_bounds = array<i64: 16, 128>}, {pipeline_mode = #tpu.pipeline_mode<synchronous>, transform_indices = @transform_1, window_bounds = array<i64: 64, 16>}, {pipeline_mode = #tpu.pipeline_mode<synchronous>, transform_indices = @transform_2, window_bounds = array<i64: 64, 64>}, {pipeline_mode = #tpu.pipeline_mode<synchronous>, transform_indices = @transform_3, window_bounds = array<i64: 64, 1>}, {pipeline_mode = #tpu.pipeline_mode<synchronous>, transform_indices = @transform_4, window_bounds = array<i64: 64, 1>}, {pipeline_mode = #tpu.pipeline_mode<synchronous>, transform_indices = @transform_5, window_bounds = array<i64: 1, 1>}, {transform_indices = @transform_6, window_bounds = array<i64: 1, 128>}]} {
    %c0 = arith.constant 0 : index
    %c0_0 = arith.constant 0 : index
    %0 = vector.load %arg1[%c0, %c0_0] : memref<16x128xbf16, #tpu.memory_space<vmem>>, vector<16x128xbf16>
    %c0_1 = arith.constant 0 : index
    %c0_2 = arith.constant 0 : index
    %1 = vector.load %arg2[%c0_1, %c0_2] : memref<64x16xbf16, #tpu.memory_space<vmem>>, vector<64x16xbf16>
    %cst = arith.constant dense<0.000000e+00> : vector<64x128xf32>
    %2 = tpu.matmul %1, %0, %cst {dimension_numbers = #tpu.dot_dimension_numbers<[1], [0], [0], [1], [0, 0, 1, 1], [], []>} : vector<64x16xbf16>, vector<16x128xbf16>, vector<64x128xf32> -> vector<64x128xf32>
    %cst_3 = arith.constant 0.000000e+00 : f32
    %3 = vector.broadcast %cst_3 : f32 to vector<64x128xf32>
    %4 = arith.maximumf %2, %3 : vector<64x128xf32>
    %c0_4 = arith.constant 0 : index
    %c0_5 = arith.constant 0 : index
    %5 = vector.load %arg3[%c0_4, %c0_5] : memref<64x64xbf16, #tpu.memory_space<vmem>>, vector<64x64xbf16>
    %6 = arith.truncf %4 : vector<64x128xf32> to vector<64x128xbf16>
    %cst_6 = arith.constant dense<0.000000e+00> : vector<64x128xf32>
    %7 = tpu.matmul %5, %6, %cst_6 {dimension_numbers = #tpu.dot_dimension_numbers<[1], [0], [0], [1], [0, 0, 1, 1], [], []>} : vector<64x64xbf16>, vector<64x128xbf16>, vector<64x128xf32> -> vector<64x128xf32>
    %c0_7 = arith.constant 0 : index
    %c0_8 = arith.constant 0 : index
    %8 = vector.load %arg4[%c0_7, %c0_8] : memref<64x1xf32, #tpu.memory_space<vmem>>, vector<64x1xf32>
    %9 = vector.broadcast %8 : vector<64x1xf32> to vector<64x128xf32>
    %10 = arith.addf %7, %9 : vector<64x128xf32>
    %cst_9 = arith.constant 0.000000e+00 : f32
    %11 = vector.broadcast %cst_9 : f32 to vector<64x128xf32>
    %12 = arith.maximumf %10, %11 : vector<64x128xf32>
    %c0_10 = arith.constant 0 : index
    %c0_11 = arith.constant 0 : index
    %13 = vector.load %arg5[%c0_10, %c0_11] : memref<64x1xf32, #tpu.memory_space<vmem>>, vector<64x1xf32>
    %14 = vector.broadcast %13 : vector<64x1xf32> to vector<64x128xf32>
    %15 = arith.mulf %14, %12 : vector<64x128xf32>
    %cst_12 = arith.constant dense<0.000000e+00> : vector<128xf32>
    %16 = vector.multi_reduction <add>, %15, %cst_12 [0] : vector<64x128xf32> to vector<128xf32>
    %17 = vector.shape_cast %16 : vector<128xf32> to vector<1x128xf32>
    %c0_13 = arith.constant 0 : index
    %c0_14 = arith.constant 0 : index
    %18 = vector.load %arg6[%c0_13, %c0_14] : memref<1x1xf32, #tpu.memory_space<vmem>>, vector<1x1xf32>
    %19 = vector.broadcast %18 : vector<1x1xf32> to vector<1x128xf32>
    %20 = arith.addf %17, %19 : vector<1x128xf32>
    %c0_15 = arith.constant 0 : index
    %c0_16 = arith.constant 0 : index
    %21 = vector.load %arg7[%c0_15, %c0_16] : memref<1x128xf32, #tpu.memory_space<vmem>>, vector<1x128xf32>
    tpu.vector_store %arg7[%c0_15, %c0_16], %20 {strides = array<i32>} : memref<1x128xf32, #tpu.memory_space<vmem>>, vector<1x128xf32>,
    return
  }
  func.func @transform_0(%arg0: i32) -> (i32, i32) {
    %c0_i32 = arith.constant 0 : i32
    %c0_i32_0 = arith.constant 0 : i32
    return %c0_i32, %arg0 : i32, i32
  }
  func.func @transform_1(%arg0: i32) -> (i32, i32) {
    %c0_i32 = arith.constant 0 : i32
    %c0_i32_0 = arith.constant 0 : i32
    %c0_i32_1 = arith.constant 0 : i32
    return %c0_i32, %c0_i32_0 : i32, i32
  }
  func.func @transform_2(%arg0: i32) -> (i32, i32) {
    %c0_i32 = arith.constant 0 : i32
    %c0_i32_0 = arith.constant 0 : i32
    %c0_i32_1 = arith.constant 0 : i32
    return %c0_i32, %c0_i32_0 : i32, i32
  }
  func.func @transform_3(%arg0: i32) -> (i32, i32) {
    %c0_i32 = arith.constant 0 : i32
    %c0_i32_0 = arith.constant 0 : i32
    %c0_i32_1 = arith.constant 0 : i32
    return %c0_i32, %c0_i32_0 : i32, i32
  }
  func.func @transform_4(%arg0: i32) -> (i32, i32) {
    %c0_i32 = arith.constant 0 : i32
    %c0_i32_0 = arith.constant 0 : i32
    %c0_i32_1 = arith.constant 0 : i32
    return %c0_i32, %c0_i32_0 : i32, i32
  }
  func.func @transform_5(%arg0: i32) -> (i32, i32) {
    %c0_i32 = arith.constant 0 : i32
    %c0_i32_0 = arith.constant 0 : i32
    %c0_i32_1 = arith.constant 0 : i32
    return %c0_i32, %c0_i32_0 : i32, i32
  }
  func.func @transform_6(%arg0: i32) -> (i32, i32) {
    %c0_i32 = arith.constant 0 : i32
    %c0_i32_0 = arith.constant 0 : i32
    return %c0_i32, %arg0 : i32, i32
  }
}

</mosaic_0001>

<llo_original>
// kernel: discriminator_forward.2
$region0: #{discriminator_forward.2}
  #allocation0 [shape = 'u32[]', space=smem, size = 0x4, offset = 0x4, fixed_abs, tag = 'smem constant byte address 0x4 - core index']
  #allocation1 [shape = 'u32[72,128]{1,0:T(1,128)}', space=vmem, size = 0x9000, scoped, tag = 'internal scratch']
  #allocation2 [shape = 'u32[2048]{0}', space=vmem, size = 0x2000, scoped, tag = 'scoped memory for discriminator_forward.2']
  #allocation3 [shape = 'u32[2048]{0}', space=vmem, size = 0x2000, scoped, tag = 'scoped memory for discriminator_forward.2']
  #allocation4 [shape = 'u32[2048]{0}', space=vmem, size = 0x2000, scoped, tag = 'scoped memory for discriminator_forward.2']
  #allocation5 [shape = 'u32[2048]{0}', space=vmem, size = 0x2000, scoped, tag = 'scoped memory for discriminator_forward.2']
  #allocation6 [shape = 'u32[2048]{0}', space=vmem, size = 0x2000, scoped, tag = 'scoped memory for discriminator_forward.2']
  #allocation7 [shape = 'f32[1,1]{1,0:T(1,128)S(1)}', space=vmem, size = 0x200, scoped, tag = 'scoped memory for discriminator_forward.2']
  %s0 = inlined_call_operand.vmem [shape: bf16[64,16], index: 0, kind: input, shape index: {}]
  %s1 = inlined_call_operand.vmem [shape: bf16[64,64], index: 1, kind: input, shape index: {}]
  %s2 = inlined_call_operand.vmem [shape: f32[64,1], index: 2, kind: input, shape index: {}]
  %s3 = inlined_call_operand.vmem [shape: f32[64,1], index: 3, kind: input, shape index: {}]
  %s4 = inlined_call_operand.<no memory space> [shape: f32[1,1], index: 4, kind: input, shape index: {}]
  %s5 = inlined_call_operand.<no memory space> [shape: s32[], index: 5, kind: input, shape index: {}]
  %s6 = inlined_call_operand.<no memory space> [shape: s32[], index: 6, kind: input, shape index: {}]
  %s7 = inlined_call_operand.vmem [shape: bf16[16,10], index: 7, kind: input, shape index: {}]
  %s8 = inlined_call_operand.<no memory space> [shape: bf16[], index: 8, kind: input, shape index: {}]
  %s9 = inlined_call_operand.<no memory space> [shape: bf16[], index: 9, kind: input, shape index: {}]
  %s10 = inlined_call_operand.vmem [shape: f32[1,128], index: 10, kind: output, shape index: {}]
  %s11 = sld [smem:[#allocation0]]
  $region34: #{discriminator_forward.2} parent=0
    _
  %s13 = ssub.s32 1, %s11
  %s14 = scalar_select 0, %s13, %s11
  %v15 = vstv %s5
  %v16 = vstv %s6
  %v17 = vstv %s8
  %v18 = vunpack.i.l.bf16 %v17
  %v20 = vunpack.i.h.bf16 %v17
  %v22 = vstv %s9
  %v23 = vunpack.i.l.bf16 %v22
  %v25 = vunpack.i.h.bf16 %v22
  %v27 = vstv %s4
  %28 = vst [vmem:[#allocation7] sm:$0x1] %v27
  $region1: #{discriminator_forward.2} parent=0
    #allocation8 [shape = 'u8[4096]{0}', space=vmem, size = 0x1000, dematerialized = true, scoped, tag = 'FusionAdapter Buffer %fusion.5 = bf16[16,128]{1,0:T(8,128)(2,1)} fusion(%param_5.3, %param_6.5, %param_7.5, %param_8.5, %param_9.1), kind=kLoop, calls=%fused_computation.5.clone.clone, metadata={op_name="jit(discriminator_forward)/convert_element_type" stack_frame_id=10}']
    // Predicated region
    $region2: #{discriminator_forward.2} parent=1 // pred_check
      _
    $region3: #{discriminator_forward.2} parent=1 // pred_check_branch
      %30 = sbr.rel (0) target = $region5
    $region4: #{discriminator_forward.2} parent=1 // pred_region
      _
    $region5: #{discriminator_forward.2} parent=1 // pred_fallthru
      _
    // Predicated region
    $region6: #{discriminator_forward.2} parent=1 // pred_check
      _
    $region7: #{discriminator_forward.2} parent=1 // pred_check_branch
      %32 = sbr.rel (0) target = $region9
    $region8: #{discriminator_forward.2} parent=1 // pred_region
      _
    $region9: #{discriminator_forward.2} parent=1 // pred_fallthru
      _
    // Predicated region
    $region10: #{discriminator_forward.2} parent=1 // pred_check
      _
    $region11: #{discriminator_forward.2} parent=1 // pred_check_branch
      %34 = sbr.rel (0) target = $region13
    $region12: #{discriminator_forward.2} parent=1 // pred_region
      _
    $region13: #{discriminator_forward.2} parent=1 // pred_fallthru
      _
    // Predicated region
    $region14: #{discriminator_forward.2} parent=1 // pred_check
      _
    $region15: #{discriminator_forward.2} parent=1 // pred_check_branch
      %36 = sbr.rel (0) target = $region17
    $region16: #{discriminator_forward.2} parent=1 // pred_region
      _
    $region17: #{discriminator_forward.2} parent=1 // pred_fallthru
      _
    // Predicated region
    $region18: #{discriminator_forward.2} parent=1 // pred_check
      _
    $region19: #{discriminator_forward.2} parent=1 // pred_check_branch
      %38 = sbr.rel (0) target = $region21
    $region20: #{discriminator_forward.2} parent=1 // pred_region
      _
    $region21: #{discriminator_forward.2} parent=1 // pred_fallthru
      _
    // Predicated region
    $region22: #{discriminator_forward.2} parent=1 // pred_check
      _
    $region23: #{discriminator_forward.2} parent=1 // pred_check_branch
      %40 = sbr.rel (0) target = $region25
    $region24: #{discriminator_forward.2} parent=1 // pred_region
      _
    $region25: #{discriminator_forward.2} parent=1 // pred_fallthru
      _
    %s42 = sor.u32 255, 127
    %s43 = sand.u32 %s42, 85
    %s44 = sshrl.u32 %s43, 1
    %s45 = sor.u32 %s43, %s44
    %s46 = sand.u32 51, %s45
    %s47 = sshrl.u32 %s46, 2
    %s48 = sor.u32 %s46, %s47
    %s49 = sand.u32 15, %s48
    %v50 = vld [vmem:[%s7] sm:%s49]
    %v51 = vunpack.c.l.bf16 %v50
    %v52 = vunpack.c.h.bf16 %v50
    %v53 = vlaneseq
    %v54 = vshrl.u32 %v53, 7
    %vm56 = vcmp.lt.s32.totalorder %v54, 10
    %v57 = vsel %vm56, %v51, %v18
    %v58 = vlaneseq
    %v59 = vand.u32 %v58, 127
    %vm61 = vcmp.lt.s32.totalorder %v59, 16
    %v62 = vsel %vm61, %v57, %v18
    %v63 = vlaneseq
    %v64 = vand.u32 %v63, 127
    %67 = xla_tuple %v64, %v16
    %68 = xla_tuple %67
    %vm69 = vcmp.lt.s32.totalorder %v64, %v16
    %v70 = vsel %vm69, 1, 0
    %71 = xla_tuple %v70
    %v72 = vlaneseq
    %v73 = vshrl.u32 %v72, 7
    %76 = xla_tuple %v73, %v15
    %77 = xla_tuple %76
    %vm78 = vcmp.lt.s32.totalorder %v73, %v15
    %v79 = vsel %vm78, 1, 0
    %80 = xla_tuple %v79
    %v81 = vand.u32 %v70, %v79
    %82 = xla_tuple %v70, %v62, %v23
    %83 = xla_tuple %82
    %v84 = vsel %vm69, %v62, %v23
    %85 = xla_tuple %v84
    %86 = xla_tuple %v81, %v84, %v23
    %87 = xla_tuple %86
    %vm88 = vcmp.ne.s32.totalorder %v81, 0
    %v89 = vsel %vm88, %v84, %v23
    %90 = xla_tuple %v89
    %v91 = vpack.c.bf16 0.0, %v89
    %s93 = ssub.s32 16, 1
    %94 = vst [vmem:[#allocation8] sm:%s93] %v91
    %s95 = scalar_lea.vmem %s7, 4
    %s97 = sor.u32 255, 127
    %s98 = sand.u32 %s97, 85
    %s99 = sshrl.u32 %s98, 1
    %s100 = sor.u32 %s98, %s99
    %s101 = sand.u32 51, %s100
    %s102 = sshrl.u32 %s101, 2
    %s103 = sor.u32 %s101, %s102
    %s104 = sand.u32 15, %s103
    %v105 = vld [vmem:[%s95] sm:%s104]
    %v106 = vunpack.c.l.bf16 %v105
    %v107 = vunpack.c.h.bf16 %v105
    %v108 = vlaneseq
    %v109 = vshrl.u32 %v108, 7
    %v110 = vadd.s32 %v109, 8
    %vm111 = vcmp.lt.s32.totalorder %v110, 10
    %v112 = vsel %vm111, %v106, %v18
    %v113 = vlaneseq
    %v114 = vand.u32 %v113, 127
    %vm116 = vcmp.lt.s32.totalorder %v114, 16
    %v117 = vsel %vm116, %v112, %v18
    %v118 = vlaneseq
    %v119 = vand.u32 %v118, 127
    %122 = xla_tuple %v119, %v16
    %123 = xla_tuple %122
    %vm124 = vcmp.lt.s32.totalorder %v119, %v16
    %v125 = vsel %vm124, 1, 0
    %126 = xla_tuple %v125
    %v127 = vlaneseq
    %v128 = vshrl.u32 %v127, 7
    %v130 = vadd.s32 %v128, 8
    %131 = xla_tuple %v130, %v15
    %132 = xla_tuple %131
    %vm133 = vcmp.lt.s32.totalorder %v130, %v15
    %v134 = vsel %vm133, 1, 0
    %135 = xla_tuple %v134
    %v136 = vand.u32 %v125, %v134
    %137 = xla_tuple %v125, %v117, %v23
    %138 = xla_tuple %137
    %v139 = vsel %vm124, %v117, %v23
    %140 = xla_tuple %v139
    %141 = xla_tuple %v136, %v139, %v23
    %142 = xla_tuple %141
    %vm143 = vcmp.ne.s32.totalorder %v136, 0
    %v144 = vsel %vm143, %v139, %v23
    %145 = xla_tuple %v144
    %s146 = scalar_lea.vmem [#allocation8], 4
    %v147 = vpack.c.bf16 0.0, %v144
    %s149 = ssub.s32 16, 1
    %150 = vst [vmem:[%s146] sm:%s149] %v147
    %v152 = vld [vmem:[#allocation8] sm:$0xf]
    %v153 = vld [vmem:[#allocation8 + $0x4] sm:$0xf]
    %v154 = vld [vmem:[%s0] sm:$0xf]
    %v155 = vld [vmem:[%s0 + $0x4] sm:$0xf]
    %v156 = vld [vmem:[%s0 + $0x8] sm:$0xf]
    %v157 = vld [vmem:[%s0 + $0xc] sm:$0xf]
    %v158 = vld [vmem:[%s0 + $0x10] sm:$0xf]
    %v159 = vld [vmem:[%s0 + $0x14] sm:$0xf]
    %v160 = vld [vmem:[%s0 + $0x18] sm:$0xf]
    %v161 = vld [vmem:[%s0 + $0x1c] sm:$0xf]
    %v170 = vunpack.c.l.b16 %v154
    %v171 = vunpack.c.l.b16 %v155
    %v172 = vunpack.c.l.b16 %v156
    %v173 = vunpack.c.l.b16 %v157
    %v174 = vunpack.c.l.b16 %v158
    %v175 = vunpack.c.l.b16 %v159
    %v176 = vunpack.c.l.b16 %v160
    %v177 = vunpack.c.l.b16 %v161
    %v178 = vpack.c.b16 %v171, %v170
    %v179 = vpack.c.b16 %v173, %v172
    %v180 = vpack.c.b16 %v175, %v174
    %v181 = vpack.c.b16 %v177, %v176
    %v184 = vunpack.c.l.b16 %v152
    %v185 = vunpack.c.l.b16 %v153
    %v186 = vpack.c.b16 %v185, %v184
    %vm188 = vcmask 130048
    %v190 = vsel %vm188, %v178, 0
    %v193 = vsel %vm188, %v179, 0
    %v196 = vsel %vm188, %v180, 0
    %v199 = vsel %vm188, %v181, 0
    %201 = vmatpush.bf16.msra.mxu0 0
    %202 = vmatpush.bf16.msra.mxu0 0
    %203 = vmatpush.bf16.msra.mxu0 0
    %204 = vmatpush.bf16.msra.mxu0 0
    %205 = vmatpush.bf16.msra.mxu0 0
    %206 = vmatpush.bf16.msra.mxu0 0
    %207 = vmatpush.bf16.msra.mxu0 0
    %208 = vmatpush.bf16.msra.mxu0 %v186
    %209 = vmatmul.bf16.gmra.mxu0 %v190
    %v210 = vpop.f32.mrf.mxu0
    %v211 = vadd.f32 0.0, %v210
    %v212 = vpop.f32.mrf.mxu0
    %v213 = vadd.f32 0.0, %v212
    %214 = vmatmul.bf16.gmra.mxu0 %v193
    %v215 = vpop.f32.mrf.mxu0
    %v216 = vadd.f32 0.0, %v215
    %v217 = vpop.f32.mrf.mxu0
    %v218 = vadd.f32 0.0, %v217
    %219 = vmatmul.bf16.gmra.mxu0 %v196
    %v220 = vpop.f32.mrf.mxu0
    %v221 = vadd.f32 0.0, %v220
    %v222 = vpop.f32.mrf.mxu0
    %v223 = vadd.f32 0.0, %v222
    %224 = vmatmul.bf16.gmra.mxu0 %v199
    %v225 = vpop.f32.mrf.mxu0
    %v226 = vadd.f32 0.0, %v225
    %v227 = vpop.f32.mrf.mxu0
    %v228 = vadd.f32 0.0, %v227
    %229 = vdwg.mxu0
    %v230 = vmax.f32 %v211, 0.0
    %v231 = vmax.f32 %v213, 0.0
    %v232 = vmax.f32 %v216, 0.0
    %v233 = vmax.f32 %v218, 0.0
    %v234 = vmax.f32 %v221, 0.0
    %v235 = vmax.f32 %v223, 0.0
    %v236 = vmax.f32 %v226, 0.0
    %v237 = vmax.f32 %v228, 0.0
    %v238 = vld [vmem:[%s1] sm:$0xf]
    %v239 = vld [vmem:[%s1 + $0x4] sm:$0xf]
    %v240 = vld [vmem:[%s1 + $0x8] sm:$0xf]
    %v241 = vld [vmem:[%s1 + $0xc] sm:$0xf]
    %v242 = vld [vmem:[%s1 + $0x10] sm:$0xf]
    %v243 = vld [vmem:[%s1 + $0x14] sm:$0xf]
    %v244 = vld [vmem:[%s1 + $0x18] sm:$0xf]
    %v245 = vld [vmem:[%s1 + $0x1c] sm:$0xf]
    %v246 = vpack.c.bf16 %v231, %v230
    %v247 = vpack.c.bf16 %v233, %v232
    %v248 = vpack.c.bf16 %v235, %v234
    %v249 = vpack.c.bf16 %v237, %v236
    %v250 = vld [vmem:[%s2] sm:$0xff]
    %v251 = vld [vmem:[%s2 + $0x8] sm:$0xff]
    %v252 = vld [vmem:[%s2 + $0x10] sm:$0xff]
    %v253 = vld [vmem:[%s2 + $0x18] sm:$0xff]
    %v254 = vld [vmem:[%s2 + $0x20] sm:$0xff]
    %v255 = vld [vmem:[%s2 + $0x28] sm:$0xff]
    %v256 = vld [vmem:[%s2 + $0x30] sm:$0xff]
    %v257 = vld [vmem:[%s2 + $0x38] sm:$0xff]
    %259 = vset.pattern.permute.xlu0 0
    %260 = vperm.xlu0 %259, %v250
    %v261 = vpop.permute.xlu0 %260
    %264 = vset.pattern.permute.xlu0 0
    %265 = vperm.xlu0 %264, %v251
    %v266 = vpop.permute.xlu0 %265
    %269 = vset.pattern.permute.xlu0 0
    %270 = vperm.xlu0 %269, %v252
    %v271 = vpop.permute.xlu0 %270
    %274 = vset.pattern.permute.xlu0 0
    %275 = vperm.xlu0 %274, %v253
    %v276 = vpop.permute.xlu0 %275
    %279 = vset.pattern.permute.xlu0 0
    %280 = vperm.xlu0 %279, %v254
    %v281 = vpop.permute.xlu0 %280
    %284 = vset.pattern.permute.xlu0 0
    %285 = vperm.xlu0 %284, %v255
    %v286 = vpop.permute.xlu0 %285
    %289 = vset.pattern.permute.xlu0 0
    %290 = vperm.xlu0 %289, %v256
    %v291 = vpop.permute.xlu0 %290
    %294 = vset.pattern.permute.xlu0 0
    %295 = vperm.xlu0 %294, %v257
    %v296 = vpop.permute.xlu0 %295
    %v306 = vunpack.c.l.b16 %v238
    %v307 = vunpack.c.l.b16 %v239
    %v308 = vunpack.c.l.b16 %v240
    %v309 = vunpack.c.l.b16 %v241
    %v310 = vunpack.c.l.b16 %v242
    %v311 = vunpack.c.l.b16 %v243
    %v312 = vunpack.c.l.b16 %v244
    %v313 = vunpack.c.l.b16 %v245
    %v314 = vpack.c.b16 %v307, %v306
    %v315 = vpack.c.b16 %v309, %v308
    %v316 = vpack.c.b16 %v311, %v310
    %v317 = vpack.c.b16 %v313, %v312
    %vm318 = vcmask 523264
    %v320 = vsel %vm318, %v314, 0
    %v323 = vsel %vm318, %v315, 0
    %v326 = vsel %vm318, %v316, 0
    %v329 = vsel %vm318, %v317, 0
    %331 = vmatpush.bf16.msra.mxu0 0
    %332 = vmatpush.bf16.msra.mxu0 0
    %333 = vmatpush.bf16.msra.mxu0 0
    %334 = vmatpush.bf16.msra.mxu0 0
    %335 = vmatpush.bf16.msra.mxu0 %v249
    %336 = vmatpush.bf16.msra.mxu0 %v248
    %337 = vmatpush.bf16.msra.mxu0 %v247
    %338 = vmatpush.bf16.msra.mxu0 %v246
    %339 = vmatmul.bf16.gmra.mxu0 %v320
    %v340 = vpop.f32.mrf.mxu0
    %v341 = vadd.f32 %v261, %v340
    %v342 = vpop.f32.mrf.mxu0
    %v343 = vadd.f32 %v266, %v342
    %344 = vmatmul.bf16.gmra.mxu0 %v323
    %v345 = vpop.f32.mrf.mxu0
    %v346 = vadd.f32 %v271, %v345
    %v347 = vpop.f32.mrf.mxu0
    %v348 = vadd.f32 %v276, %v347
    %349 = vmatmul.bf16.gmra.mxu0 %v326
    %v350 = vpop.f32.mrf.mxu0
    %v351 = vadd.f32 %v281, %v350
    %v352 = vpop.f32.mrf.mxu0
    %v353 = vadd.f32 %v286, %v352
    %354 = vmatmul.bf16.gmra.mxu0 %v329
    %v355 = vpop.f32.mrf.mxu0
    %v356 = vadd.f32 %v291, %v355
    %v357 = vpop.f32.mrf.mxu0
    %v358 = vadd.f32 %v296, %v357
    %359 = vdwg.mxu0
    %v360 = vmax.f32 %v341, 0.0
    %v361 = vmax.f32 %v343, 0.0
    %v362 = vmax.f32 %v346, 0.0
    %v363 = vmax.f32 %v348, 0.0
    %v364 = vmax.f32 %v351, 0.0
    %v365 = vmax.f32 %v353, 0.0
    %v366 = vmax.f32 %v356, 0.0
    %v367 = vmax.f32 %v358, 0.0
    %v368 = vld [vmem:[%s3] sm:$0xff]
    %v369 = vld [vmem:[%s3 + $0x8] sm:$0xff]
    %v370 = vld [vmem:[%s3 + $0x10] sm:$0xff]
    %v371 = vld [vmem:[%s3 + $0x18] sm:$0xff]
    %v372 = vld [vmem:[%s3 + $0x20] sm:$0xff]
    %v373 = vld [vmem:[%s3 + $0x28] sm:$0xff]
    %v374 = vld [vmem:[%s3 + $0x30] sm:$0xff]
    %v375 = vld [vmem:[%s3 + $0x38] sm:$0xff]
    %377 = vset.pattern.permute.xlu0 0
    %378 = vperm.xlu0 %377, %v368
    %v379 = vpop.permute.xlu0 %378
    %382 = vset.pattern.permute.xlu0 0
    %383 = vperm.xlu0 %382, %v369
    %v384 = vpop.permute.xlu0 %383
    %387 = vset.pattern.permute.xlu0 0
    %388 = vperm.xlu0 %387, %v370
    %v389 = vpop.permute.xlu0 %388
    %392 = vset.pattern.permute.xlu0 0
    %393 = vperm.xlu0 %392, %v371
    %v394 = vpop.permute.xlu0 %393
    %397 = vset.pattern.permute.xlu0 0
    %398 = vperm.xlu0 %397, %v372
    %v399 = vpop.permute.xlu0 %398
    %402 = vset.pattern.permute.xlu0 0
    %403 = vperm.xlu0 %402, %v373
    %v404 = vpop.permute.xlu0 %403
    %407 = vset.pattern.permute.xlu0 0
    %408 = vperm.xlu0 %407, %v374
    %v409 = vpop.permute.xlu0 %408
    %412 = vset.pattern.permute.xlu0 0
    %413 = vperm.xlu0 %412, %v375
    %v414 = vpop.permute.xlu0 %413
    %v416 = vmul.f32 %v379, %v360
    %v417 = vmul.f32 %v384, %v361
    %v418 = vmul.f32 %v389, %v362
    %v419 = vmul.f32 %v394, %v363
    %v420 = vmul.f32 %v399, %v364
    %v421 = vmul.f32 %v404, %v365
    %v422 = vmul.f32 %v409, %v366
    %v423 = vmul.f32 %v414, %v367
    %v424 = vadd.f32 %v416, %v417
    %v425 = vadd.f32 %v424, %v418
    %v426 = vadd.f32 %v425, %v419
    %v427 = vadd.f32 %v426, %v420
    %v428 = vadd.f32 %v427, %v421
    %v429 = vadd.f32 %v428, %v422
    %v430 = vadd.f32 %v429, %v423
    %v431 = vrot.slane %v430, 4
    %v432 = vadd.f32 %v430, %v431
    %v433 = vrot.slane %v432, 2
    %v434 = vadd.f32 %v432, %v433
    %v435 = vrot.slane %v434, 1
    %v436 = vadd.f32 %v434, %v435
    %v437 = vld [vmem:[#allocation7] sm:$0x1]
    %439 = vset.pattern.permute.xlu0 0
    %440 = vperm.xlu0 %439, %v437
    %v441 = vpop.permute.xlu0 %440
    %v443 = vperm.slane %v441, 0
    %v444 = vadd.f32 %v436, %v443
    %445 = vst [vmem:[%s10] sm:$0x1] %v444
    // Predicated region
    $region26: #{discriminator_forward.2} parent=1 // pred_check
      _
    $region27: #{discriminator_forward.2} parent=1 // pred_check_branch
      %447 = sbr.rel (0) target = $region29
    $region28: #{discriminator_forward.2} parent=1 // pred_region
      _
    $region29: #{discriminator_forward.2} parent=1 // pred_fallthru
      _
    // Predicated region
    $region30: #{discriminator_forward.2} parent=1 // pred_check
      _
    $region31: #{discriminator_forward.2} parent=1 // pred_check_branch
      %449 = sbr.rel (0) target = $region33
    $region32: #{discriminator_forward.2} parent=1 // pred_region
      _
    $region33: #{discriminator_forward.2} parent=1 // pred_fallthru
      _

</llo_original>
